<compile_context>
chip_gen: v7x
topology: tpu7x:2x2x1
jax: 0.10.0
libtpu: 0.0.40
codegen_flags: <defaults>
</compile_context>

<pallas_src>
import jax
import jax.numpy as jnp
from jax.experimental import pallas as pl
from jax.experimental.pallas import tpu as pltpu

INPUT_SIZE = 24
HIDDEN = 16
NUM_CLASSES = 2
K_AUG = INPUT_SIZE + 1  # ones column folds b1 into W1


def _round_up(n, m):
    return ((n + m - 1) // m) * m


def smoke_mlp_kernel(xa_ref, w1a_ref, w2_ref, b2_ref, o_ref):
    # [TM, 25] bf16 @ [25, 16] bf16 -> f32 accumulate on the MXU (b1 folded in).
    h = jnp.dot(xa_ref[...], w1a_ref[...], preferred_element_type=jnp.float32)
    # Sigmoid: exp + reciprocal stay on the EUP slot (free filler here).
    h = jax.nn.sigmoid(h)
    # [TM, 16] f32 @ [16, 2] f32 -> logits; b2 broadcast-add is negligible.
    logits = jnp.dot(h, w2_ref[...], preferred_element_type=jnp.float32) + b2_ref[...]
    o_ref[...] = logits.astype(o_ref.dtype)


def smoke_network(x, w1, b1, w2, b2, *, tm=1024, input_dtype=jnp.bfloat16):
    B = x.shape[0]
    assert x.shape[1] == INPUT_SIZE

    # Fold b1 into W1: append a ones column to x and the bias row to W1.
    x_aug = jnp.concatenate([x, jnp.ones((B, 1), x.dtype)], axis=1)
    w1_aug = jnp.concatenate([w1, b1], axis=0)

    # bf16 inputs halve HBM read traffic; MXU accumulates in f32.
    x_aug = x_aug.astype(input_dtype)
    w1_aug = w1_aug.astype(input_dtype)

    # Batch tile: multiple of 16 (bf16 sublane packing); pad B so every grid
    # step sees a full, unmasked tile (cheapest correct tail handling).
    tm = max(16, min(tm, _round_up(B, 16)))
    B_pad = _round_up(B, tm)
    if B_pad != B:
        x_aug = jnp.pad(x_aug, ((0, B_pad - B), (0, 0)))

    grid = (B_pad // tm,)

    flops = 2 * B_pad * (K_AUG * HIDDEN + HIDDEN * NUM_CLASSES)
    bytes_accessed = (
        B_pad * K_AUG * x_aug.dtype.itemsize        # x tiles (dominant term)
        + K_AUG * HIDDEN * w1_aug.dtype.itemsize    # resident W1 (+b1 row)
        + HIDDEN * NUM_CLASSES * 4 + NUM_CLASSES * 4  # resident W2, b2
        + B_pad * NUM_CLASSES * 4                   # logits out
    )

    out = pl.pallas_call(
        smoke_mlp_kernel,
        out_shape=jax.ShapeDtypeStruct((B_pad, NUM_CLASSES), jnp.float32),
        grid=grid,
        in_specs=[
            pl.BlockSpec((tm, K_AUG), lambda i: (i, 0)),            # x tile marches
            pl.BlockSpec((K_AUG, HIDDEN), lambda i: (0, 0)),        # W1 resident
            pl.BlockSpec((HIDDEN, NUM_CLASSES), lambda i: (0, 0)),  # W2 resident
            pl.BlockSpec((1, NUM_CLASSES), lambda i: (0, 0)),       # b2 resident
        ],
        out_specs=pl.BlockSpec((tm, NUM_CLASSES), lambda i: (i, 0)),
        compiler_params=pltpu.CompilerParams(
            # v7x: shard batch tiles across both TensorCores; no-op on v5e/v6e.
            dimension_semantics=("parallel",)),
        cost_estimate=pl.CostEstimate(
            flops=flops,
            transcendentals=B_pad * HIDDEN,
            bytes_accessed=bytes_accessed),
    )(x_aug, w1_aug, w2, b2)
    return out[:B]


def init_params(key):
    # Mirrors nn.Linear's default U(-1/sqrt(fan_in), 1/sqrt(fan_in)).
    k1, k2, k3, k4 = jax.random.split(key, 4)
    bound1 = 1.0 / jnp.sqrt(jnp.float32(INPUT_SIZE))
    bound2 = 1.0 / jnp.sqrt(jnp.float32(HIDDEN))
    w1 = jax.random.uniform(k1, (INPUT_SIZE, HIDDEN), jnp.float32, -bound1, bound1)
    b1 = jax.random.uniform(k2, (1, HIDDEN), jnp.float32, -bound1, bound1)
    w2 = jax.random.uniform(k3, (HIDDEN, NUM_CLASSES), jnp.float32, -bound2, bound2)
    b2 = jax.random.uniform(k4, (1, NUM_CLASSES), jnp.float32, -bound2, bound2)
    return w1, b1, w2, b2


def _matched_reference(x, w1, b1, w2, b2):
    # Same bf16-augmented operands as the kernel, f32 math -> tight comparison.
    B = x.shape[0]
    xa = jnp.concatenate([x, jnp.ones((B, 1), x.dtype)], axis=1).astype(jnp.bfloat16)
    w1a = jnp.concatenate([w1, b1], axis=0).astype(jnp.bfloat16)
    h = jax.nn.sigmoid(xa.astype(jnp.float32) @ w1a.astype(jnp.float32))
    return h @ w2 + b2


if __name__ == "__main__":
    key = jax.random.PRNGKey(0)
    pkey, xkey, xkey2 = jax.random.split(key, 3)
    w1, b1, w2, b2 = init_params(pkey)

    # Small smoke shape (single grid step).
    B = 8
    x = jax.random.normal(xkey, (B, INPUT_SIZE), jnp.float32)
    logits = smoke_network(x, w1, b1, w2, b2)
    jax.block_until_ready(logits)
    assert logits.shape == (B, NUM_CLASSES)

    # Tight check against a precision-matched reference.
    ref = _matched_reference(x, w1, b1, w2, b2)
    assert jnp.allclose(logits, ref, atol=1e-4, rtol=1e-4)
    # Loose check against the pure-f32 module semantics (bf16 input cast only).
    ref_f32 = jax.nn.sigmoid(x @ w1 + b1) @ w2 + b2
    assert jnp.allclose(logits, ref_f32, atol=1e-1, rtol=1e-1)

    # Exercise the batch grid + padded tail: B=300 with TM=128 -> 3 grid steps,
    # last tile is 84 rows of padding that get sliced off.
    B2 = 300
    x2 = jax.random.normal(xkey2, (B2, INPUT_SIZE), jnp.float32)
    logits2 = smoke_network(x2, w1, b1, w2, b2, tm=128)
    jax.block_until_ready(logits2)
    assert logits2.shape == (B2, NUM_CLASSES)
    ref2 = _matched_reference(x2, w1, b1, w2, b2)
    assert jnp.allclose(logits2, ref2, atol=1e-4, rtol=1e-4)

    print("KERNEL_OK")
</pallas_src>

<mosaic_0001>
module attributes {stable_mosaic.version = 11 : i64} {
  func.func @smoke_mlp_kernel(%arg0: i32, %arg1: memref<16x25xbf16, #tpu.memory_space<vmem>>, %arg2: memref<25x16xbf16, #tpu.memory_space<vmem>>, %arg3: memref<16x2xf32, #tpu.memory_space<vmem>>, %arg4: memref<1x2xf32, #tpu.memory_space<vmem>>, %arg5: memref<16x2xf32, #tpu.memory_space<vmem>>) attributes {dimension_semantics = [#tpu.dimension_semantics<parallel>], iteration_bounds = array<i64: 1>, scalar_prefetch = 0 : i64, scratch_operands = 0 : i64, tpu.core_type = #tpu.core_type<tc>, window_params = [{transform_indices = @transform_0, window_bounds = array<i64: 16, 25>}, {pipeline_mode = #tpu.pipeline_mode<synchronous>, transform_indices = @transform_1, window_bounds = array<i64: 25, 16>}, {pipeline_mode = #tpu.pipeline_mode<synchronous>, transform_indices = @transform_2, window_bounds = array<i64: 16, 2>}, {pipeline_mode = #tpu.pipeline_mode<synchronous>, transform_indices = @transform_3, window_bounds = array<i64: 1, 2>}, {transform_indices = @transform_4, window_bounds = array<i64: 16, 2>}]} {
    %c0 = arith.constant 0 : index
    %c0_0 = arith.constant 0 : index
    %0 = vector.load %arg1[%c0, %c0_0] : memref<16x25xbf16, #tpu.memory_space<vmem>>, vector<16x25xbf16>
    %c0_1 = arith.constant 0 : index
    %c0_2 = arith.constant 0 : index
    %1 = vector.load %arg2[%c0_1, %c0_2] : memref<25x16xbf16, #tpu.memory_space<vmem>>, vector<25x16xbf16>
    %cst = arith.constant dense<0.000000e+00> : vector<16x16xf32>
    %2 = tpu.matmul %0, %1, %cst {dimension_numbers = #tpu.dot_dimension_numbers<[1], [0], [0], [1], [0, 0, 1, 1], [], []>} : vector<16x25xbf16>, vector<25x16xbf16>, vector<16x16xf32> -> vector<16x16xf32>
    %3 = arith.negf %2 : vector<16x16xf32>
    %4 = math.exp %3 : vector<16x16xf32>
    %cst_3 = arith.constant 1.000000e+00 : f32
    %5 = vector.broadcast %cst_3 : f32 to vector<16x16xf32>
    %6 = arith.addf %5, %4 : vector<16x16xf32>
    %7 = arith.divf %5, %6 : vector<16x16xf32>
    %c0_4 = arith.constant 0 : index
    %c0_5 = arith.constant 0 : index
    %8 = vector.load %arg3[%c0_4, %c0_5] : memref<16x2xf32, #tpu.memory_space<vmem>>, vector<16x2xf32>
    %cst_6 = arith.constant dense<0.000000e+00> : vector<16x2xf32>
    %9 = tpu.matmul %7, %8, %cst_6 {dimension_numbers = #tpu.dot_dimension_numbers<[1], [0], [0], [1], [0, 0, 1, 1], [], []>} : vector<16x16xf32>, vector<16x2xf32>, vector<16x2xf32> -> vector<16x2xf32>
    %c0_7 = arith.constant 0 : index
    %c0_8 = arith.constant 0 : index
    %10 = vector.load %arg4[%c0_7, %c0_8] : memref<1x2xf32, #tpu.memory_space<vmem>>, vector<1x2xf32>
    %11 = vector.broadcast %10 : vector<1x2xf32> to vector<16x2xf32>
    %12 = arith.addf %9, %11 : vector<16x2xf32>
    %c0_9 = arith.constant 0 : index
    %c0_10 = arith.constant 0 : index
    %13 = vector.load %arg5[%c0_9, %c0_10] : memref<16x2xf32, #tpu.memory_space<vmem>>, vector<16x2xf32>
    tpu.vector_store %arg5[%c0_9, %c0_10], %12 {strides = array<i32>} : memref<16x2xf32, #tpu.memory_space<vmem>>, vector<16x2xf32>,
    return
  }
  func.func @transform_0(%arg0: i32) -> (i32, i32) {
    %c0_i32 = arith.constant 0 : i32
    %c0_i32_0 = arith.constant 0 : i32
    return %arg0, %c0_i32 : i32, i32
  }
  func.func @transform_1(%arg0: i32) -> (i32, i32) {
    %c0_i32 = arith.constant 0 : i32
    %c0_i32_0 = arith.constant 0 : i32
    %c0_i32_1 = arith.constant 0 : i32
    return %c0_i32, %c0_i32_0 : i32, i32
  }
  func.func @transform_2(%arg0: i32) -> (i32, i32) {
    %c0_i32 = arith.constant 0 : i32
    %c0_i32_0 = arith.constant 0 : i32
    %c0_i32_1 = arith.constant 0 : i32
    return %c0_i32, %c0_i32_0 : i32, i32
  }
  func.func @transform_3(%arg0: i32) -> (i32, i32) {
    %c0_i32 = arith.constant 0 : i32
    %c0_i32_0 = arith.constant 0 : i32
    %c0_i32_1 = arith.constant 0 : i32
    return %c0_i32, %c0_i32_0 : i32, i32
  }
  func.func @transform_4(%arg0: i32) -> (i32, i32) {
    %c0_i32 = arith.constant 0 : i32
    %c0_i32_0 = arith.constant 0 : i32
    return %arg0, %c0_i32 : i32, i32
  }
}

</mosaic_0001>

<llo_original>
// kernel: tpu_custom_call.1
$region0: #{tpu_custom_call.1}
  #allocation0 [shape = 'u32[]', space=smem, size = 0x4, offset = 0x4, fixed_abs, tag = 'smem constant byte address 0x4 - core index']
  #allocation1 [shape = 'u32[144,128]{1,0:T(1,128)}', space=vmem, size = 0x12000, scoped, tag = 'internal scratch']
  %s0 = inlined_call_operand.vmem [shape: bf16[16,25], index: 0, kind: input, shape index: {}]
  %s1 = inlined_call_operand.vmem [shape: bf16[25,16], index: 1, kind: input, shape index: {}]
  %s2 = inlined_call_operand.vmem [shape: f32[16,2], index: 2, kind: input, shape index: {}]
  %s3 = inlined_call_operand.vmem [shape: f32[1,2], index: 3, kind: input, shape index: {}]
  %s4 = inlined_call_operand.vmem [shape: f32[16,2], index: 4, kind: output, shape index: {}]
  %s5 = sld [smem:[#allocation0]]
  $region26: #{tpu_custom_call.1} parent=0
    _
  %s7 = ssub.s32 1, %s5
  %s8 = scalar_select 0, %s7, %s5
  // Predicated region
  $region2: #{tpu_custom_call.1} parent=0 // pred_check
    _
  $region3: #{tpu_custom_call.1} parent=0 // pred_check_branch
    %10 = sbr.rel (0) target = $region5
  $region4: #{tpu_custom_call.1} parent=0 // pred_region
    _
  $region5: #{tpu_custom_call.1} parent=0 // pred_fallthru
    _
  // Predicated region
  $region6: #{tpu_custom_call.1} parent=0 // pred_check
    _
  $region7: #{tpu_custom_call.1} parent=0 // pred_check_branch
    %12 = sbr.rel (0) target = $region9
  $region8: #{tpu_custom_call.1} parent=0 // pred_region
    _
  $region9: #{tpu_custom_call.1} parent=0 // pred_fallthru
    _
  // Predicated region
  $region10: #{tpu_custom_call.1} parent=0 // pred_check
    _
  $region11: #{tpu_custom_call.1} parent=0 // pred_check_branch
    %14 = sbr.rel (0) target = $region13
  $region12: #{tpu_custom_call.1} parent=0 // pred_region
    _
  $region13: #{tpu_custom_call.1} parent=0 // pred_fallthru
    _
  // Predicated region
  $region14: #{tpu_custom_call.1} parent=0 // pred_check
    _
  $region15: #{tpu_custom_call.1} parent=0 // pred_check_branch
    %16 = sbr.rel (0) target = $region17
  $region16: #{tpu_custom_call.1} parent=0 // pred_region
    _
  $region17: #{tpu_custom_call.1} parent=0 // pred_fallthru
    _
  %v18 = vld [vmem:[%s0] sm:$0xf]
  %v19 = vld [vmem:[%s0 + $0x4] sm:$0xf]
  %v20 = vld [vmem:[%s1] sm:$0xf]
  %v21 = vld [vmem:[%s1 + $0x4] sm:$0xf]
  %v22 = vld [vmem:[%s1 + $0x8] sm:$0xf]
  %v23 = vld [vmem:[%s1 + $0xc] sm:$0x1]
  %v26 = vunpack.c.l.b16 %v18
  %v27 = vunpack.c.l.b16 %v19
  %v28 = vpack.c.b16 %v27, %v26
  %v33 = vunpack.c.l.b16 %v20
  %v34 = vunpack.c.l.b16 %v21
  %v35 = vunpack.c.l.b16 %v22
  %v36 = vunpack.c.l.b16 %v23
  %v37 = vpack.c.b16 %v34, %v33
  %v38 = vpack.c.b16 %v36, %v35
  %vm40 = vcmask 203776
  %v42 = vsel %vm40, %v28, 0
  %vm44 = vcmask 1043456
  %vm45 = vcmask 1044480
  %v46 = vsel %vm44, 4294967295, 65535
  %v47 = vsel %vm45, %v46, 0
  %v49 = vand.u32 %v38, %v47
  %51 = vmatprep.subr.bf16.mxu0 0
  %52 = vmatpush1.bf16.msra.mxu0 %v37
  %53 = vmatprep.subr.bf16.mxu0 0
  %54 = vmatpush1.bf16.msra.mxu0 %v49
  %55 = vmatprep.subr.bf16.mxu0 0
  %56 = vmatpush1.bf16.msra.mxu0 0
  %57 = vmatprep.subr.bf16.mxu0 0
  %58 = vmatpush1.bf16.msra.mxu0 0
  %59 = vmatprep.subr.bf16.mxu0 0
  %60 = vmatpush1.bf16.msra.mxu0 0
  %61 = vmatprep.subr.bf16.mxu0 0
  %62 = vmatpush1.bf16.msra.mxu0 0
  %63 = vmatprep.subr.bf16.mxu0 0
  %64 = vmatpush1.bf16.msra.mxu0 0
  %65 = vmatprep.subr.bf16.mxu0 0
  %66 = vmatpush1.bf16.msra.mxu0 0
  %67 = vmatprep.subr.bf16.mxu0 0
  %68 = vmatpush1.bf16.msra.mxu0 0
  %69 = vmatprep.subr.bf16.mxu0 0
  %70 = vmatpush1.bf16.msra.mxu0 0
  %71 = vmatprep.subr.bf16.mxu0 0
  %72 = vmatpush1.bf16.msra.mxu0 0
  %73 = vmatprep.subr.bf16.mxu0 0
  %74 = vmatpush1.bf16.msra.mxu0 0
  %75 = vmatprep.subr.bf16.mxu0 0
  %76 = vmatpush1.bf16.msra.mxu0 0
  %77 = vmatprep.subr.bf16.mxu0 0
  %78 = vmatpush1.bf16.msra.mxu0 0
  %79 = vmatprep.subr.bf16.mxu0 0
  %80 = vmatpush1.bf16.msra.mxu0 0
  %81 = vmatprep.subr.bf16.mxu0 0
  %82 = vmatpush1.bf16.msra.mxu0 0
  %83 = vmatprep.mubr.bf16.mxu0 0
  %84 = vmatmul.mubr.bf16.gmra.mrb[0].mxu0 %v42
  %v85 = vpop.f32.mrb[0].mxu0
  %v86 = vadd.f32 0.0, %v85
  %v87 = vpop.f32.mrb[0].mxu0
  %v88 = vpop.f32.mrb[0].mxu0
  %v89 = vadd.f32 0.0, %v88
  %v90 = vpop.f32.mrb[0].mxu0
  %91 = vdwg.mxu0
  %v92 = vxor.u32 %v86, 2147483648
  %v93 = vxor.u32 %v89, 2147483648
  %v94 = vmul.f32 %v92, 1.442695
  %v95 = vpow.pop %v94
  %v96 = vmul.f32 %v93, 1.442695
  %v97 = vpow.pop %v96
  %v98 = vadd.f32 %v95, 1.0
  %v99 = vadd.f32 %v97, 1.0
  %v100 = vrcp.pop %v98
  %v101 = vmul.f32 1.0, %v100
  %v102 = vrcp.pop %v99
  %v103 = vmul.f32 1.0, %v102
  %v104 = vld [vmem:[%s2] sm:$0xff]
  %v105 = vld [vmem:[%s2 + $0x8] sm:$0xff]
  %v106 = vld [vmem:[%s3] sm:$0x1]
  %v108 = vlaneseq
  %v109 = vshrl.u32 %v108, 7
  %v110 = vsub.s32 0, %v109
  %v111 = vrot.slane %v106, %v110
  %vm113 = vcmask 130048
  %v115 = vsel %vm113, %v101, 0
  %v118 = vsel %vm113, %v103, 0
  %120 = vmatprep.subr.mxu0 0.0
  %121 = vmatpush1.msra.mxu0 %v104
  %122 = vmatprep.subr.mxu0 0.0
  %123 = vmatpush1.msra.mxu0 %v105
  %124 = vmatprep.subr.mxu0 0.0
  %125 = vmatpush1.msra.mxu0 0.0
  %126 = vmatprep.subr.mxu0 0.0
  %127 = vmatpush1.msra.mxu0 0.0
  %128 = vmatprep.subr.mxu0 0.0
  %129 = vmatpush1.msra.mxu0 0.0
  %130 = vmatprep.subr.mxu0 0.0
  %131 = vmatpush1.msra.mxu0 0.0
  %132 = vmatprep.subr.mxu0 0.0
  %133 = vmatpush1.msra.mxu0 0.0
  %134 = vmatprep.subr.mxu0 0.0
  %135 = vmatpush1.msra.mxu0 0.0
  %136 = vmatprep.subr.mxu0 0.0
  %137 = vmatpush1.msra.mxu0 0.0
  %138 = vmatprep.subr.mxu0 0.0
  %139 = vmatpush1.msra.mxu0 0.0
  %140 = vmatprep.subr.mxu0 0.0
  %141 = vmatpush1.msra.mxu0 0.0
  %142 = vmatprep.subr.mxu0 0.0
  %143 = vmatpush1.msra.mxu0 0.0
  %144 = vmatprep.subr.mxu0 0.0
  %145 = vmatpush1.msra.mxu0 0.0
  %146 = vmatprep.subr.mxu0 0.0
  %147 = vmatpush1.msra.mxu0 0.0
  %148 = vmatprep.subr.mxu0 0.0
  %149 = vmatpush1.msra.mxu0 0.0
  %150 = vmatprep.subr.mxu0 0.0
  %151 = vmatpush1.msra.mxu0 0.0
  %152 = vmatprep.subr.mxu0 0.0
  %153 = vmatpush1.msra.mxu0 0.0
  %154 = vmatprep.subr.mxu0 0.0
  %155 = vmatpush1.msra.mxu0 0.0
  %156 = vmatprep.subr.mxu0 0.0
  %157 = vmatpush1.msra.mxu0 0.0
  %158 = vmatprep.subr.mxu0 0.0
  %159 = vmatpush1.msra.mxu0 0.0
  %160 = vmatprep.subr.mxu0 0.0
  %161 = vmatpush1.msra.mxu0 0.0
  %162 = vmatprep.subr.mxu0 0.0
  %163 = vmatpush1.msra.mxu0 0.0
  %164 = vmatprep.subr.mxu0 0.0
  %165 = vmatpush1.msra.mxu0 0.0
  %166 = vmatprep.subr.mxu0 0.0
  %167 = vmatpush1.msra.mxu0 0.0
  %168 = vmatprep.subr.mxu0 0.0
  %169 = vmatpush1.msra.mxu0 0.0
  %170 = vmatprep.subr.mxu0 0.0
  %171 = vmatpush1.msra.mxu0 0.0
  %172 = vmatprep.subr.mxu0 0.0
  %173 = vmatpush1.msra.mxu0 0.0
  %174 = vmatprep.subr.mxu0 0.0
  %175 = vmatpush1.msra.mxu0 0.0
  %176 = vmatprep.subr.mxu0 0.0
  %177 = vmatpush1.msra.mxu0 0.0
  %178 = vmatprep.subr.mxu0 0.0
  %179 = vmatpush1.msra.mxu0 0.0
  %180 = vmatprep.subr.mxu0 0.0
  %181 = vmatpush1.msra.mxu0 0.0
  %182 = vmatprep.subr.mxu0 0.0
  %183 = vmatpush1.msra.mxu0 0.0
  %184 = vmatprep.mubr.f32.mxu0 0.0
  %185 = vmatmul.mubr.f32.gmra.mrb[0].mxu0 %v115
  %v186 = vpop.f32.mrb[0].mxu0
  %v187 = vadd.f32 %v111, %v186
  %v188 = vpop.f32.mrb[0].mxu0
  %189 = vmatprep.mubr.f32.mxu0 0.0
  %190 = vmatmul.mubr.f32.gmra.mrb[0].mxu0 %v118
  %v191 = vpop.f32.mrb[0].mxu0
  %v192 = vadd.f32 %v111, %v191
  %v193 = vpop.f32.mrb[0].mxu0
  %194 = vdwg.mxu0
  %vm195 = vcmask 15360
  %196 = vst.msk [vmem:[%s4] sm:$0xff] %vm195, %v187
  %197 = vst.msk [vmem:[%s4 + $0x8] sm:$0xff] %vm195, %v192
  // Predicated region
  $region18: #{tpu_custom_call.1} parent=0 // pred_check
    _
  $region19: #{tpu_custom_call.1} parent=0 // pred_check_branch
    %199 = sbr.rel (0) target = $region21
  $region20: #{tpu_custom_call.1} parent=0 // pred_region
    _
  $region21: #{tpu_custom_call.1} parent=0 // pred_fallthru
    _
  // Predicated region
  $region22: #{tpu_custom_call.1} parent=0 // pred_check
    _
  $region23: #{tpu_custom_call.1} parent=0 // pred_check_branch
    %201 = sbr.rel (0) target = $region25
  $region24: #{tpu_custom_call.1} parent=0 // pred_region
    _
  $region25: #{tpu_custom_call.1} parent=0 // pred_fallthru
    _

</llo_original>
